<compile_context>
chip_gen: v5e
topology: v5e:2x2
jax: 0.10.0
libtpu: 0.0.40
codegen_flags: <defaults>
</compile_context>

<pallas_src>
import functools

import jax
import jax.numpy as jnp
import numpy as np
from jax.experimental import pallas as pl
from jax.experimental.pallas import tpu as pltpu


NBUF = 4              # gather slots (chunks resident / in flight)
LOOKAHEAD = NBUF - 1  # chunks prefetched ahead of the consumer
_UNROLL = 8           # DMA-issue loop unroll factor


# ---------------------------------------------------------------------------
# Parameter construction (deterministic, in-script)
# ---------------------------------------------------------------------------
def make_positional_encoding(max_len: int, d_model: int) -> jnp.ndarray:
    """pe[:,0::2] = sin(pos * exp(2i * -ln(10000)/d)), pe[:,1::2] = cos(...)."""
    pos = np.arange(max_len, dtype=np.float32)[:, None]
    mul_term = np.exp(
        np.arange(0, d_model, 2, dtype=np.float32) * -(np.log(10000.0) / d_model)
    )
    pe = np.zeros((max_len, d_model), dtype=np.float32)
    pe[:, 0::2] = np.sin(pos * mul_term)
    pe[:, 1::2] = np.cos(pos * mul_term)
    return jnp.asarray(pe)


def _round_up(x: int, m: int) -> int:
    return ((x + m - 1) // m) * m


# ---------------------------------------------------------------------------
# Pallas kernel
# ---------------------------------------------------------------------------
def _embed_pe_kernel(tok_ref,      # SMEM [G_pad*Ts] int32 (scalar prefetch)
                     emb_hbm,      # HBM  [V, D_pad]       (memory_space=pl.ANY)
                     pe_ref,       # VMEM [S_pad, D_pad]   (resident, constant block)
                     out_ref,      # VMEM [Ts, D_pad]
                     gbuf,         # VMEM scratch [NBUF, Ts, D_pad]
                     sem,          # DMA semaphores [NBUF]
                     *, chunk, n_inner, n_pe_chunks, p_dropout, training, seed):
    c = pl.program_id(0)          # "parallel" axis (2-way TensorCore split on v7x)
    j = pl.program_id(1)          # "arbitrary" axis (carries DMA pipeline state)
    g = c * n_inner + j           # global chunk index

    def start_fetch(chunk_idx, slot_):
        base = chunk_idx * chunk

        @pl.loop(0, chunk // _UNROLL)
        def _(t0):
            for u in range(_UNROLL):          # manual 8x unroll of descriptor pushes
                t = t0 * _UNROLL + u
                tok = tok_ref[base + t]
                pltpu.make_async_copy(
                    emb_hbm.at[pl.ds(tok, 1), :],
                    gbuf.at[slot_, pl.ds(t, 1), :],
                    sem.at[slot_],
                ).start()

    # Prime the gather pipeline at the first inner step of this core's range.
    @pl.when(j == 0)
    def _():
        for k in range(min(LOOKAHEAD, n_inner)):
            start_fetch(c * n_inner + k, k)

    # Steady state: keep LOOKAHEAD chunks in flight ahead of the consumer.
    if n_inner > LOOKAHEAD:
        @pl.when(j + LOOKAHEAD < n_inner)
        def _():
            start_fetch(g + LOOKAHEAD, (j + LOOKAHEAD) % NBUF)

    # Aggregate wait: every row copy of this slot incremented sem[slot] by its byte
    # count; one wait sized like the whole slot buffer drains them all (src/dst of
    # this descriptor only set the size - they are never copied).
    slot = j % NBUF
    pltpu.make_async_copy(gbuf.at[slot], gbuf.at[slot], sem.at[slot]).wait()

    # Positional-encoding rows for this chunk, sliced from the VMEM-resident table.
    pos_off = pl.multiple_of((g % n_pe_chunks) * chunk, chunk)
    row = gbuf[slot] + pe_ref[pl.ds(pos_off, chunk), :]

    if training and p_dropout > 0.0:
        # Inverted dropout; integer-threshold compare on raw PRNG bits.
        # TODO(synk): mask stream uses the TPU hardware PRNG, not bit-identical to
        # torch's RNG (semantics of nn.Dropout(p) in training mode are matched).
        pltpu.prng_seed(seed + g)
        bits = pltpu.prng_random_bits(row.shape)
        if bits.dtype != jnp.uint32:
            bits = pltpu.bitcast(bits, jnp.uint32)
        thresh = jnp.uint32(min(int(round(p_dropout * (1 << 32))), (1 << 32) - 1))
        keep = bits >= thresh
        scale = jnp.asarray(1.0 / (1.0 - p_dropout), dtype=row.dtype)
        row = jnp.where(keep, row * scale, jnp.zeros_like(row))

    out_ref[...] = row.astype(out_ref.dtype)


# ---------------------------------------------------------------------------
# Wrapper
# ---------------------------------------------------------------------------
def transformer_embedding(tokens, emb_table, pe, *, p_dropout=0.1,
                          training=False, seed=0):
    """tokens: [B, S] int -> [B, S, D] (emb_table dtype)."""
    B, S = tokens.shape
    V, D = emb_table.shape
    assert pe.shape[1] == D and S <= pe.shape[0], "seq_len must be <= max_len"

    dtype = emb_table.dtype
    itemsize = jnp.dtype(dtype).itemsize
    # bf16 tables: keep add/dropout in bf16 (v6e/v7x native); otherwise f32.
    pe_dtype = jnp.bfloat16 if dtype == jnp.bfloat16 else jnp.float32
    pe_itemsize = jnp.dtype(pe_dtype).itemsize

    # Lane-dense feature dim and chunk-friendly sequence padding.
    D_pad = _round_up(max(D, 1), 128)
    S_pad = _round_up(max(S, 1), 128)
    Ts = 256 if (S_pad % 256 == 0 and 256 * D_pad * itemsize <= (2 << 20)) else 128
    C = S_pad // Ts                      # PE chunks per sequence

    # Clamp token ids (out-of-range ids would otherwise drive an OOB row DMA).
    tok = jnp.clip(tokens.astype(jnp.int32), 0, V - 1)
    if S_pad != S:
        tok = jnp.pad(tok, ((0, 0), (0, S_pad - S)))
    tok_flat = tok.reshape(B * S_pad)

    # Pad the chunk count to an even number for the 2-way "parallel" core split.
    G = B * C
    G_pad = _round_up(max(G, 2), 2)
    if G_pad * Ts != tok_flat.shape[0]:
        tok_flat = jnp.pad(tok_flat, (0, G_pad * Ts - tok_flat.shape[0]))
    n_inner = G_pad // 2
    N_tot = G_pad * Ts
    # TODO(synk): for very large B*S, stage token ids per-chunk instead of one
    # scalar-prefetch SMEM array (1-D SMEM pads to next_pow2(4*N) bytes).

    # Pad the embedding table / PE feature dim; PE rows padded to exactly S_pad.
    emb_p = emb_table if D_pad == D else jnp.pad(emb_table, ((0, 0), (0, D_pad - D)))
    pe_rows = min(S_pad, pe.shape[0])
    pe_use = pe[:pe_rows].astype(pe_dtype)
    if pe_rows < S_pad or D_pad != D:
        pe_use = jnp.pad(pe_use, ((0, S_pad - pe_rows), (0, D_pad - D)))

    kernel = functools.partial(
        _embed_pe_kernel, chunk=Ts, n_inner=n_inner, n_pe_chunks=C,
        p_dropout=float(p_dropout), training=bool(training), seed=int(seed),
    )

    # Advisory cost: gather + output + resident PE (once) + token ids.
    cost = pl.CostEstimate(
        flops=N_tot * D_pad, transcendentals=0,
        bytes_accessed=int(N_tot * D_pad * itemsize * 2
                           + S_pad * D_pad * pe_itemsize + N_tot * 4))

    # VMEM budget: resident PE (x2 conservative), NBUF gather slots, output blocks.
    vmem_need = (2 * S_pad * D_pad * pe_itemsize
                 + NBUF * Ts * D_pad * itemsize
                 + 2 * Ts * D_pad * itemsize)
    try:
        vmem_cap = int(pltpu.get_tpu_info().vmem_capacity_bytes)
    except Exception:
        vmem_cap = 64 * 2**20            # v7x per-core floor is the safe fallback
    vmem_limit = int(max(16 << 20, min(2 * vmem_need + (4 << 20),
                                       int(0.9 * vmem_cap))))
    # TODO(synk): on v5e/v6e (128 MiB VMEM) small tables could be made fully
    # VMEM-resident to skip per-row HBM DMAs entirely.

    out_flat = pl.pallas_call(
        kernel,
        out_shape=jax.ShapeDtypeStruct((N_tot, D_pad), dtype),
        grid_spec=pltpu.PrefetchScalarGridSpec(
            num_scalar_prefetch=1,                              # token ids -> SMEM
            grid=(2, n_inner),
            in_specs=[
                pl.BlockSpec(memory_space=pl.ANY),              # emb table in HBM
                pl.BlockSpec((S_pad, D_pad), lambda c, j, tok: (0, 0)),  # PE resident
            ],
            out_specs=pl.BlockSpec((Ts, D_pad),
                                   lambda c, j, tok: (c * n_inner + j, 0)),
            scratch_shapes=[
                pltpu.VMEM((NBUF, Ts, D_pad), dtype),
                pltpu.SemaphoreType.DMA((NBUF,)),
            ],
        ),
        compiler_params=pltpu.CompilerParams(
            dimension_semantics=("parallel", "arbitrary"),
            vmem_limit_bytes=vmem_limit,
        ),
        cost_estimate=cost,
    )(tok_flat, emb_p, pe_use)

    out = out_flat[: B * S_pad].reshape(B, S_pad, D_pad)
    return out[:, :S, :D]


# ---------------------------------------------------------------------------
# Demo / correctness check
# ---------------------------------------------------------------------------
if __name__ == "__main__":
    vocab_size = 50
    d_model = 32
    max_len = 64
    batch, seq_len = 2, 8

    key = jax.random.PRNGKey(0)
    k_tok, k_emb = jax.random.split(key)

    tokens = jax.random.randint(k_tok, (batch, seq_len), 0, vocab_size, dtype=jnp.int32)
    # nn.Embedding default init is N(0, 1)
    emb_table = jax.random.normal(k_emb, (vocab_size, d_model), dtype=jnp.float32)
    pe = make_positional_encoding(max_len, d_model)

    # Eval-mode forward (dropout is identity at inference, as in nn.Dropout.eval()).
    out = transformer_embedding(tokens, emb_table, pe, p_dropout=0.1, training=False)
    out = jax.block_until_ready(out)

    # Pure-JAX reference of the module's forward (eval mode).
    ref = emb_table[tokens] + pe[None, :seq_len, :]

    assert out.shape == (batch, seq_len, d_model), out.shape
    np.testing.assert_allclose(np.asarray(out), np.asarray(ref), rtol=1e-6, atol=1e-6)

    print("KERNEL_OK")
</pallas_src>

<mosaic_0001>
module attributes {stable_mosaic.version = 11 : i64} {
  func.func @_embed_pe_kernel(%arg0: i32, %arg1: i32, %arg2: memref<256xi32, #tpu.memory_space<smem>>, %arg3: memref<50x128xf32, #tpu.memory_space<any>>, %arg4: memref<128x128xf32, #tpu.memory_space<vmem>>, %arg5: memref<128x128xf32, #tpu.memory_space<vmem>>, %arg6: memref<4x128x128xf32, #tpu.memory_space<vmem>>, %arg7: memref<4x!tpu.dma_semaphore, #tpu.memory_space<semaphore_mem>>) attributes {dimension_semantics = [#tpu.dimension_semantics<parallel>, #tpu.dimension_semantics<arbitrary>], iteration_bounds = array<i64: 2, 1>, scalar_prefetch = 1 : i64, scratch_operands = 2 : i64, tpu.core_type = #tpu.core_type<tc>, window_params = [{}, {pipeline_mode = #tpu.pipeline_mode<synchronous>, transform_indices = @transform_1, window_bounds = array<i64: 128, 128>}, {transform_indices = @transform_2, window_bounds = array<i64: 128, 128>}]} {
    %c1_i32 = arith.constant 1 : i32
    %0 = arith.muli %arg0, %c1_i32 : i32
    %1 = arith.addi %0, %arg1 : i32
    %c0_i32 = arith.constant 0 : i32
    %2 = arith.cmpi eq, %arg1, %c0_i32 : i32
    %3 = arith.extui %2 : i1 to i32
    %c0_i32_0 = arith.constant 0 : i32
    %4 = arith.cmpi ne, %3, %c0_i32_0 : i32
    scf.if %4 {
      %c1_i32_20 = arith.constant 1 : i32
      %40 = arith.muli %arg0, %c1_i32_20 : i32
      %c0_i32_21 = arith.constant 0 : i32
      %41 = arith.addi %40, %c0_i32_21 : i32
      %c128_i32_22 = arith.constant 128 : i32
      %42 = arith.muli %41, %c128_i32_22 : i32
      %c0_i32_23 = arith.constant 0 : i32
      %c16_i32 = arith.constant 16 : i32
      %43 = arith.addi %c0_i32_23, %c16_i32 : i32
      %c1_i32_24 = arith.constant 1 : i32
      scf.for %arg8 = %c0_i32_23 to %43 step %c1_i32_24  : i32 {
        %c1_i32_26 = arith.constant 1 : i32
        %44 = arith.muli %arg8, %c1_i32_26 : i32
        %c0_i32_27 = arith.constant 0 : i32
        %45 = arith.addi %c0_i32_27, %44 : i32
        %c8_i32 = arith.constant 8 : i32
        %46 = arith.muli %45, %c8_i32 : i32
        %c0_i32_28 = arith.constant 0 : i32
        %47 = arith.addi %46, %c0_i32_28 : i32
        %48 = arith.addi %42, %47 : i32
        %49 = arith.index_cast %48 : i32 to index
        %50 = memref.load %arg2[%49] : memref<256xi32, #tpu.memory_space<smem>>
        %c0_i32_29 = arith.constant 0 : i32
        %c0_i32_30 = arith.constant 0 : i32
        %c0_i32_31 = arith.constant 0 : i32
        %51 = tpu.memref_slice %arg3[%50, %c0_i32_31] : memref<50x128xf32, #tpu.memory_space<any>> -> memref<1x128xf32, #tpu.memory_space<any>>
        %c0_i32_32 = arith.constant 0 : i32
        %52 = tpu.memref_slice %arg6[%c0_i32_29, %47, %c0_i32_32] : memref<4x128x128xf32, #tpu.memory_space<vmem>> -> memref<1x1x128xf32, #tpu.memory_space<vmem>>
        %53 = tpu.memref_squeeze %52 : memref<1x1x128xf32, #tpu.memory_space<vmem>> -> memref<1x128xf32, #tpu.memory_space<vmem>>
        %54 = tpu.memref_slice %arg7[%c0_i32_30] : memref<4x!tpu.dma_semaphore, #tpu.memory_space<semaphore_mem>> -> memref<1x!tpu.dma_semaphore, #tpu.memory_space<semaphore_mem>>
        %55 = tpu.memref_squeeze %54 : memref<1x!tpu.dma_semaphore, #tpu.memory_space<semaphore_mem>> -> memref<!tpu.dma_semaphore, #tpu.memory_space<semaphore_mem>>
        tpu.enqueue_dma source(%51 : memref<1x128xf32, #tpu.memory_space<any>>) target(%53 : memref<1x128xf32, #tpu.memory_space<vmem>>) target_semaphore(%55 : memref<!tpu.dma_semaphore, #tpu.memory_space<semaphore_mem>>)
        %c8_i32_33 = arith.constant 8 : i32
        %56 = arith.muli %45, %c8_i32_33 : i32
        %c1_i32_34 = arith.constant 1 : i32
        %57 = arith.addi %56, %c1_i32_34 : i32
        %58 = arith.addi %42, %57 : i32
        %59 = arith.index_cast %58 : i32 to index
        %60 = memref.load %arg2[%59] : memref<256xi32, #tpu.memory_space<smem>>
        %c0_i32_35 = arith.constant 0 : i32
        %c0_i32_36 = arith.constant 0 : i32
        %c0_i32_37 = arith.constant 0 : i32
        %61 = tpu.memref_slice %arg3[%60, %c0_i32_37] : memref<50x128xf32, #tpu.memory_space<any>> -> memref<1x128xf32, #tpu.memory_space<any>>
        %c0_i32_38 = arith.constant 0 : i32
        %62 = tpu.memref_slice %arg6[%c0_i32_35, %57, %c0_i32_38] : memref<4x128x128xf32, #tpu.memory_space<vmem>> -> memref<1x1x128xf32, #tpu.memory_space<vmem>>
        %63 = tpu.memref_squeeze %62 : memref<1x1x128xf32, #tpu.memory_space<vmem>> -> memref<1x128xf32, #tpu.memory_space<vmem>>
        %64 = tpu.memref_slice %arg7[%c0_i32_36] : memref<4x!tpu.dma_semaphore, #tpu.memory_space<semaphore_mem>> -> memref<1x!tpu.dma_semaphore, #tpu.memory_space<semaphore_mem>>
        %65 = tpu.memref_squeeze %64 : memref<1x!tpu.dma_semaphore, #tpu.memory_space<semaphore_mem>> -> memref<!tpu.dma_semaphore, #tpu.memory_space<semaphore_mem>>
        tpu.enqueue_dma source(%61 : memref<1x128xf32, #tpu.memory_space<any>>) target(%63 : memref<1x128xf32, #tpu.memory_space<vmem>>) target_semaphore(%65 : memref<!tpu.dma_semaphore, #tpu.memory_space<semaphore_mem>>)
        %c8_i32_39 = arith.constant 8 : i32
        %66 = arith.muli %45, %c8_i32_39 : i32
        %c2_i32 = arith.constant 2 : i32
        %67 = arith.addi %66, %c2_i32 : i32
        %68 = arith.addi %42, %67 : i32
        %69 = arith.index_cast %68 : i32 to index
        %70 = memref.load %arg2[%69] : memref<256xi32, #tpu.memory_space<smem>>
        %c0_i32_40 = arith.constant 0 : i32
        %c0_i32_41 = arith.constant 0 : i32
        %c0_i32_42 = arith.constant 0 : i32
        %71 = tpu.memref_slice %arg3[%70, %c0_i32_42] : memref<50x128xf32, #tpu.memory_space<any>> -> memref<1x128xf32, #tpu.memory_space<any>>
        %c0_i32_43 = arith.constant 0 : i32
        %72 = tpu.memref_slice %arg6[%c0_i32_40, %67, %c0_i32_43] : memref<4x128x128xf32, #tpu.memory_space<vmem>> -> memref<1x1x128xf32, #tpu.memory_space<vmem>>
        %73 = tpu.memref_squeeze %72 : memref<1x1x128xf32, #tpu.memory_space<vmem>> -> memref<1x128xf32, #tpu.memory_space<vmem>>
        %74 = tpu.memref_slice %arg7[%c0_i32_41] : memref<4x!tpu.dma_semaphore, #tpu.memory_space<semaphore_mem>> -> memref<1x!tpu.dma_semaphore, #tpu.memory_space<semaphore_mem>>
        %75 = tpu.memref_squeeze %74 : memref<1x!tpu.dma_semaphore, #tpu.memory_space<semaphore_mem>> -> memref<!tpu.dma_semaphore, #tpu.memory_space<semaphore_mem>>
        tpu.enqueue_dma source(%71 : memref<1x128xf32, #tpu.memory_space<any>>) target(%73 : memref<1x128xf32, #tpu.memory_space<vmem>>) target_semaphore(%75 : memref<!tpu.dma_semaphore, #tpu.memory_space<semaphore_mem>>)
        %c8_i32_44 = arith.constant 8 : i32
        %76 = arith.muli %45, %c8_i32_44 : i32
        %c3_i32 = arith.constant 3 : i32
        %77 = arith.addi %76, %c3_i32 : i32
        %78 = arith.addi %42, %77 : i32
        %79 = arith.index_cast %78 : i32 to index
        %80 = memref.load %arg2[%79] : memref<256xi32, #tpu.memory_space<smem>>
        %c0_i32_45 = arith.constant 0 : i32
        %c0_i32_46 = arith.constant 0 : i32
        %c0_i32_47 = arith.constant 0 : i32
        %81 = tpu.memref_slice %arg3[%80, %c0_i32_47] : memref<50x128xf32, #tpu.memory_space<any>> -> memref<1x128xf32, #tpu.memory_space<any>>
        %c0_i32_48 = arith.constant 0 : i32
        %82 = tpu.memref_slice %arg6[%c0_i32_45, %77, %c0_i32_48] : memref<4x128x128xf32, #tpu.memory_space<vmem>> -> memref<1x1x128xf32, #tpu.memory_space<vmem>>
        %83 = tpu.memref_squeeze %82 : memref<1x1x128xf32, #tpu.memory_space<vmem>> -> memref<1x128xf32, #tpu.memory_space<vmem>>
        %84 = tpu.memref_slice %arg7[%c0_i32_46] : memref<4x!tpu.dma_semaphore, #tpu.memory_space<semaphore_mem>> -> memref<1x!tpu.dma_semaphore, #tpu.memory_space<semaphore_mem>>
        %85 = tpu.memref_squeeze %84 : memref<1x!tpu.dma_semaphore, #tpu.memory_space<semaphore_mem>> -> memref<!tpu.dma_semaphore, #tpu.memory_space<semaphore_mem>>
        tpu.enqueue_dma source(%81 : memref<1x128xf32, #tpu.memory_space<any>>) target(%83 : memref<1x128xf32, #tpu.memory_space<vmem>>) target_semaphore(%85 : memref<!tpu.dma_semaphore, #tpu.memory_space<semaphore_mem>>)
        %c8_i32_49 = arith.constant 8 : i32
        %86 = arith.muli %45, %c8_i32_49 : i32
        %c4_i32_50 = arith.constant 4 : i32
        %87 = arith.addi %86, %c4_i32_50 : i32
        %88 = arith.addi %42, %87 : i32
        %89 = arith.index_cast %88 : i32 to index
        %90 = memref.load %arg2[%89] : memref<256xi32, #tpu.memory_space<smem>>
        %c0_i32_51 = arith.constant 0 : i32
        %c0_i32_52 = arith.constant 0 : i32
        %c0_i32_53 = arith.constant 0 : i32
        %91 = tpu.memref_slice %arg3[%90, %c0_i32_53] : memref<50x128xf32, #tpu.memory_space<any>> -> memref<1x128xf32, #tpu.memory_space<any>>
        %c0_i32_54 = arith.constant 0 : i32
        %92 = tpu.memref_slice %arg6[%c0_i32_51, %87, %c0_i32_54] : memref<4x128x128xf32, #tpu.memory_space<vmem>> -> memref<1x1x128xf32, #tpu.memory_space<vmem>>
        %93 = tpu.memref_squeeze %92 : memref<1x1x128xf32, #tpu.memory_space<vmem>> -> memref<1x128xf32, #tpu.memory_space<vmem>>
        %94 = tpu.memref_slice %arg7[%c0_i32_52] : memref<4x!tpu.dma_semaphore, #tpu.memory_space<semaphore_mem>> -> memref<1x!tpu.dma_semaphore, #tpu.memory_space<semaphore_mem>>
        %95 = tpu.memref_squeeze %94 : memref<1x!tpu.dma_semaphore, #tpu.memory_space<semaphore_mem>> -> memref<!tpu.dma_semaphore, #tpu.memory_space<semaphore_mem>>
        tpu.enqueue_dma source(%91 : memref<1x128xf32, #tpu.memory_space<any>>) target(%93 : memref<1x128xf32, #tpu.memory_space<vmem>>) target_semaphore(%95 : memref<!tpu.dma_semaphore, #tpu.memory_space<semaphore_mem>>)
        %c8_i32_55 = arith.constant 8 : i32
        %96 = arith.muli %45, %c8_i32_55 : i32
        %c5_i32 = arith.constant 5 : i32
        %97 = arith.addi %96, %c5_i32 : i32
        %98 = arith.addi %42, %97 : i32
        %99 = arith.index_cast %98 : i32 to index
        %100 = memref.load %arg2[%99] : memref<256xi32, #tpu.memory_space<smem>>
        %c0_i32_56 = arith.constant 0 : i32
        %c0_i32_57 = arith.constant 0 : i32
        %c0_i32_58 = arith.constant 0 : i32
        %101 = tpu.memref_slice %arg3[%100, %c0_i32_58] : memref<50x128xf32, #tpu.memory_space<any>> -> memref<1x128xf32, #tpu.memory_space<any>>
        %c0_i32_59 = arith.constant 0 : i32
        %102 = tpu.memref_slice %arg6[%c0_i32_56, %97, %c0_i32_59] : memref<4x128x128xf32, #tpu.memory_space<vmem>> -> memref<1x1x128xf32, #tpu.memory_space<vmem>>
        %103 = tpu.memref_squeeze %102 : memref<1x1x128xf32, #tpu.memory_space<vmem>> -> memref<1x128xf32, #tpu.memory_space<vmem>>
        %104 = tpu.memref_slice %arg7[%c0_i32_57] : memref<4x!tpu.dma_semaphore, #tpu.memory_space<semaphore_mem>> -> memref<1x!tpu.dma_semaphore, #tpu.memory_space<semaphore_mem>>
        %105 = tpu.memref_squeeze %104 : memref<1x!tpu.dma_semaphore, #tpu.memory_space<semaphore_mem>> -> memref<!tpu.dma_semaphore, #tpu.memory_space<semaphore_mem>>
        tpu.enqueue_dma source(%101 : memref<1x128xf32, #tpu.memory_space<any>>) target(%103 : memref<1x128xf32, #tpu.memory_space<vmem>>) target_semaphore(%105 : memref<!tpu.dma_semaphore, #tpu.memory_space<semaphore_mem>>)
        %c8_i32_60 = arith.constant 8 : i32
        %106 = arith.muli %45, %c8_i32_60 : i32
        %c6_i32 = arith.constant 6 : i32
        %107 = arith.addi %106, %c6_i32 : i32
        %108 = arith.addi %42, %107 : i32
        %109 = arith.index_cast %108 : i32 to index
        %110 = memref.load %arg2[%109] : memref<256xi32, #tpu.memory_space<smem>>
        %c0_i32_61 = arith.constant 0 : i32
        %c0_i32_62 = arith.constant 0 : i32
        %c0_i32_63 = arith.constant 0 : i32
        %111 = tpu.memref_slice %arg3[%110, %c0_i32_63] : memref<50x128xf32, #tpu.memory_space<any>> -> memref<1x128xf32, #tpu.memory_space<any>>
        %c0_i32_64 = arith.constant 0 : i32
        %112 = tpu.memref_slice %arg6[%c0_i32_61, %107, %c0_i32_64] : memref<4x128x128xf32, #tpu.memory_space<vmem>> -> memref<1x1x128xf32, #tpu.memory_space<vmem>>
        %113 = tpu.memref_squeeze %112 : memref<1x1x128xf32, #tpu.memory_space<vmem>> -> memref<1x128xf32, #tpu.memory_space<vmem>>
        %114 = tpu.memref_slice %arg7[%c0_i32_62] : memref<4x!tpu.dma_semaphore, #tpu.memory_space<semaphore_mem>> -> memref<1x!tpu.dma_semaphore, #tpu.memory_space<semaphore_mem>>
        %115 = tpu.memref_squeeze %114 : memref<1x!tpu.dma_semaphore, #tpu.memory_space<semaphore_mem>> -> memref<!tpu.dma_semaphore, #tpu.memory_space<semaphore_mem>>
        tpu.enqueue_dma source(%111 : memref<1x128xf32, #tpu.memory_space<any>>) target(%113 : memref<1x128xf32, #tpu.memory_space<vmem>>) target_semaphore(%115 : memref<!tpu.dma_semaphore, #tpu.memory_space<semaphore_mem>>)
        %c8_i32_65 = arith.constant 8 : i32
        %116 = arith.muli %45, %c8_i32_65 : i32
        %c7_i32 = arith.constant 7 : i32
        %117 = arith.addi %116, %c7_i32 : i32
        %118 = arith.addi %42, %117 : i32
        %119 = arith.index_cast %118 : i32 to index
        %120 = memref.load %arg2[%119] : memref<256xi32, #tpu.memory_space<smem>>
        %c0_i32_66 = arith.constant 0 : i32
        %c0_i32_67 = arith.constant 0 : i32
        %c0_i32_68 = arith.constant 0 : i32
        %121 = tpu.memref_slice %arg3[%120, %c0_i32_68] : memref<50x128xf32, #tpu.memory_space<any>> -> memref<1x128xf32, #tpu.memory_space<any>>
        %c0_i32_69 = arith.constant 0 : i32
        %122 = tpu.memref_slice %arg6[%c0_i32_66, %117, %c0_i32_69] : memref<4x128x128xf32, #tpu.memory_space<vmem>> -> memref<1x1x128xf32, #tpu.memory_space<vmem>>
        %123 = tpu.memref_squeeze %122 : memref<1x1x128xf32, #tpu.memory_space<vmem>> -> memref<1x128xf32, #tpu.memory_space<vmem>>
        %124 = tpu.memref_slice %arg7[%c0_i32_67] : memref<4x!tpu.dma_semaphore, #tpu.memory_space<semaphore_mem>> -> memref<1x!tpu.dma_semaphore, #tpu.memory_space<semaphore_mem>>
        %125 = tpu.memref_squeeze %124 : memref<1x!tpu.dma_semaphore, #tpu.memory_space<semaphore_mem>> -> memref<!tpu.dma_semaphore, #tpu.memory_space<semaphore_mem>>
        tpu.enqueue_dma source(%121 : memref<1x128xf32, #tpu.memory_space<any>>) target(%123 : memref<1x128xf32, #tpu.memory_space<vmem>>) target_semaphore(%125 : memref<!tpu.dma_semaphore, #tpu.memory_space<semaphore_mem>>)
      }
      %c16_i32_25 = arith.constant 16 : i32
    } else {
    }
    %c4_i32 = arith.constant 4 : i32
    %c0_i32_1 = arith.constant 0 : i32
    %5 = arith.cmpi eq, %c4_i32, %c0_i32_1 : i32
    %c1_i32_2 = arith.constant 1 : i32
    %6 = arith.select %5, %c1_i32_2, %c4_i32 : i32
    %7 = arith.remsi %arg1, %6 : i32
    %c0_i32_3 = arith.constant 0 : i32
    %8 = arith.cmpi ne, %7, %c0_i32_3 : i32
    %c0_i32_4 = arith.constant 0 : i32
    %9 = arith.cmpi slt, %7, %c0_i32_4 : i32
    %c0_i32_5 = arith.constant 0 : i32
    %10 = arith.cmpi slt, %6, %c0_i32_5 : i32
    %11 = arith.xori %9, %10 : i1
    %12 = arith.andi %11, %8 : i1
    %13 = arith.addi %7, %6 : i32
    %14 = arith.select %12, %13, %7 : i32
    %c0_i32_6 = arith.constant 0 : i32
    %c0_i32_7 = arith.constant 0 : i32
    %15 = tpu.memref_slice %arg6[%14, %c0_i32_6, %c0_i32_7] : memref<4x128x128xf32, #tpu.memory_space<vmem>> -> memref<1x128x128xf32, #tpu.memory_space<vmem>>
    %16 = tpu.memref_squeeze %15 : memref<1x128x128xf32, #tpu.memory_space<vmem>> -> memref<128x128xf32, #tpu.memory_space<vmem>>
    %c0_i32_8 = arith.constant 0 : i32
    %c0_i32_9 = arith.constant 0 : i32
    %17 = tpu.memref_slice %arg6[%14, %c0_i32_8, %c0_i32_9] : memref<4x128x128xf32, #tpu.memory_space<vmem>> -> memref<1x128x128xf32, #tpu.memory_space<vmem>>
    %18 = tpu.memref_squeeze %17 : memref<1x128x128xf32, #tpu.memory_space<vmem>> -> memref<128x128xf32, #tpu.memory_space<vmem>>
    %19 = tpu.memref_slice %arg7[%14] : memref<4x!tpu.dma_semaphore, #tpu.memory_space<semaphore_mem>> -> memref<1x!tpu.dma_semaphore, #tpu.memory_space<semaphore_mem>>
    %20 = tpu.memref_squeeze %19 : memref<1x!tpu.dma_semaphore, #tpu.memory_space<semaphore_mem>> -> memref<!tpu.dma_semaphore, #tpu.memory_space<semaphore_mem>>
    tpu.wait_dma2 semaphore(%20 : memref<!tpu.dma_semaphore, #tpu.memory_space<semaphore_mem>>) src(%16 : memref<128x128xf32, #tpu.memory_space<vmem>>) dst(%18 : memref<128x128xf32, #tpu.memory_space<vmem>>)
    %c1_i32_10 = arith.constant 1 : i32
    %c0_i32_11 = arith.constant 0 : i32
    %21 = arith.cmpi eq, %c1_i32_10, %c0_i32_11 : i32
    %c1_i32_12 = arith.constant 1 : i32
    %22 = arith.select %21, %c1_i32_12, %c1_i32_10 : i32
    %23 = arith.remsi %1, %22 : i32
    %c0_i32_13 = arith.constant 0 : i32
    %24 = arith.cmpi ne, %23, %c0_i32_13 : i32
    %c0_i32_14 = arith.constant 0 : i32
    %25 = arith.cmpi slt, %23, %c0_i32_14 : i32
    %c0_i32_15 = arith.constant 0 : i32
    %26 = arith.cmpi slt, %22, %c0_i32_15 : i32
    %27 = arith.xori %25, %26 : i1
    %28 = arith.andi %27, %24 : i1
    %29 = arith.addi %23, %22 : i32
    %30 = arith.select %28, %29, %23 : i32
    %c128_i32 = arith.constant 128 : i32
    %31 = arith.muli %30, %c128_i32 : i32
    %32 = tpu.assume_multiple %31, 128 : i32
    %33 = arith.index_cast %14 : i32 to index
    %c0 = arith.constant 0 : index
    %c0_16 = arith.constant 0 : index
    %34 = vector.load %arg6[%33, %c0, %c0_16] : memref<4x128x128xf32, #tpu.memory_space<vmem>>, vector<1x128x128xf32>
    %35 = vector.shape_cast %34 : vector<1x128x128xf32> to vector<128x128xf32>
    %36 = arith.index_cast %32 : i32 to index
    %c0_17 = arith.constant 0 : index
    %37 = vector.load %arg4[%36, %c0_17] : memref<128x128xf32, #tpu.memory_space<vmem>>, vector<128x128xf32>
    %38 = arith.addf %35, %37 : vector<128x128xf32>
    %c0_18 = arith.constant 0 : index
    %c0_19 = arith.constant 0 : index
    %39 = vector.load %arg5[%c0_18, %c0_19] : memref<128x128xf32, #tpu.memory_space<vmem>>, vector<128x128xf32>
    tpu.vector_store %arg5[%c0_18, %c0_19], %38 {strides = array<i32>} : memref<128x128xf32, #tpu.memory_space<vmem>>, vector<128x128xf32>,
    return
  }
  func.func @transform_1(%arg0: i32, %arg1: i32, %arg2: memref<256xi32, #tpu.memory_space<smem>>) -> (i32, i32) {
    %c0_i32 = arith.constant 0 : i32
    %c0_i32_0 = arith.constant 0 : i32
    %c0_i32_1 = arith.constant 0 : i32
    return %c0_i32, %c0_i32_0 : i32, i32
  }
  func.func @transform_2(%arg0: i32, %arg1: i32, %arg2: memref<256xi32, #tpu.memory_space<smem>>) -> (i32, i32) {
    %c1_i32 = arith.constant 1 : i32
    %0 = arith.muli %arg0, %c1_i32 : i32
    %1 = arith.addi %0, %arg1 : i32
    %c0_i32 = arith.constant 0 : i32
    %c0_i32_0 = arith.constant 0 : i32
    return %1, %c0_i32 : i32, i32
  }
}

</mosaic_0001>

<llo_original>
// kernel: tpu_custom_call.1
$region0: #{tpu_custom_call.1}
  #allocation0 [shape = 'u32[]', space=smem, size = 0x4, offset = 0x4, fixed_abs, tag = 'smem constant byte address 0x4 - core index']
  #allocation1 [shape = 'u32[72,128]{1,0:T(1,128)}', space=vmem, size = 0x9000, scoped, tag = 'internal scratch']
  #allocation2 [shape = 'f32[4,128,128]{2,1,0:T(8,128)}', space=vmem, size = 0x40000, scoped, tag = 'scratch operand']
  #allocation3 [shape = 's32[4]{0}', space=sflag, size = 0x10, scoped, tag = 'scratch operand']
  #allocation4 [shape = 's32[1]{0}', space=sflag, size = 0x4, scoped, tag = 'scoped memory for tpu_custom_call.1']
  #allocation5 [shape = 'u8[1024]{0}', space=smem, size = 0x400, scoped, tag = 'prefetched SMEM operand 0']
  #allocation10 [shape = 's32[]', space=sflag, size = 0x4, offset = 0, fixed_abs, tag = 'sflag constant byte address 0x0 - dummy sync flag']
  #allocation11 [shape = 's32[]', space=sflag, size = 0x4, offset = 0, fixed_abs, tag = 'sflag constant byte address 0x0 - dummy sync flag']
  #allocation12 [shape = 'u32[]', space=smem, size = 0x4, offset = 0x44, fixed_abs, tag = 'smem constant byte address 0x44 - assertion arg 0']
  #allocation13 [shape = 'u32[]', space=smem, size = 0x4, offset = 0x48, fixed_abs, tag = 'smem constant byte address 0x48 - assertion arg 1']
  #allocation14 [shape = 's32[]', space=sflag, size = 0x4, offset = 0, fixed_abs, tag = 'sflag constant byte address 0x0 - dummy sync flag']
  #allocation15 [shape = 's32[]', space=sflag, size = 0x4, offset = 0, fixed_abs, tag = 'sflag constant byte address 0x0 - dummy sync flag']
  #allocation16 [shape = 's32[]', space=sflag, size = 0x4, offset = 0, fixed_abs, tag = 'sflag constant byte address 0x0 - dummy sync flag']
  #allocation17 [shape = 's32[]', space=sflag, size = 0x4, offset = 0, fixed_abs, tag = 'sflag constant byte address 0x0 - dummy sync flag']
  #allocation18 [shape = 's32[]', space=sflag, size = 0x4, offset = 0, fixed_abs, tag = 'sflag constant byte address 0x0 - dummy sync flag']
  #allocation19 [shape = 's32[]', space=sflag, size = 0x4, offset = 0, fixed_abs, tag = 'sflag constant byte address 0x0 - dummy sync flag']
  #allocation20 [shape = 's32[]', space=sflag, size = 0x4, offset = 0, fixed_abs, tag = 'sflag constant byte address 0x0 - dummy sync flag']
  #allocation21 [shape = 's32[]', space=sflag, size = 0x4, offset = 0, fixed_abs, tag = 'sflag constant byte address 0x0 - dummy sync flag']
  #allocation22 [shape = 's32[]', space=sflag, size = 0x4, offset = 0, fixed_abs, tag = 'sflag constant byte address 0x0 - dummy sync flag']
  #allocation23 [shape = 's32[]', space=sflag, size = 0x4, offset = 0, fixed_abs, tag = 'sflag constant byte address 0x0 - dummy sync flag']
  #allocation24 [shape = 's32[]', space=sflag, size = 0x4, offset = 0, fixed_abs, tag = 'sflag constant byte address 0x0 - dummy sync flag']
  #allocation25 [shape = 's32[]', space=sflag, size = 0x4, offset = 0, fixed_abs, tag = 'sflag constant byte address 0x0 - dummy sync flag']
  #allocation26 [shape = 's32[]', space=sflag, size = 0x4, offset = 0, fixed_abs, tag = 'sflag constant byte address 0x0 - dummy sync flag']
  #allocation27 [shape = 's32[]', space=sflag, size = 0x4, offset = 0, fixed_abs, tag = 'sflag constant byte address 0x0 - dummy sync flag']
  %s0 = inlined_call_operand.hbm [shape: s32[256], index: 0, kind: input, shape index: {}]
  %s1 = inlined_call_operand.hbm [shape: f32[50,128], index: 1, kind: input, shape index: {}]
  %s2 = inlined_call_operand.hbm [shape: f32[128,128], index: 2, kind: input, shape index: {}]
  %s3 = inlined_call_operand.hbm [shape: f32[256,128], index: 3, kind: output, shape index: {}]
  %s4 = sld [smem:[#allocation0]]
  $region84: #{tpu_custom_call.1} parent=0
    _
  %s6 = ssub.s32 1, %s4
  %s7 = scalar_select 0, %s6, %s4
  %s9 = sshll.u32 %s0, 4
  %s10 = int_to_ptr.hbm [resolvable:$true] %s9
  %12 = dma.hbm_to_smem %s10, 32, [#allocation5], [#allocation4]
  %14 = dma.done [#allocation4], 32
  %15 = sfence
  $region1: #{tpu_custom_call.1} parent=0
    #allocation6 [shape = 'u8[65536]{0}', space=vmem, size = 0x10000, scoped, tag = 'input window, operand 2, single buffered']
    #allocation7 [shape = 's32[2]{0}', space=sflag, size = 0x8, scoped, tag = 'scoped memory for tpu_custom_call.1']
    #allocation8 [shape = 's32[2]{0}', space=sflag, size = 0x8, scoped, tag = 'scoped memory for tpu_custom_call.1']
    #allocation9 [shape = 'u8[131072]{0}', space=vmem, size = 0x20000, scoped, tag = 'output window, operand 0']
    %16 = vsyncpa [#allocation7], 0
    %17 = vsyncpa [#allocation8], 0
    %s18 = scalar_lea.sflag [#allocation8], 1
    %19 = vsyncpa %s18, 0
    loop: start=0, step=1, limit=4
    $region2: #{tpu_custom_call.1} parent=1 // loop_pre_header
      _
    $region3: #{tpu_custom_call.1} parent=1 // loop_header
      %s21 = sphi 0, %s25
      %p22 = scmp.ge.s32.totalorder %s21, 4
      %s28 = sphi 0, %s40
      %s29 = sphi 0, %s36
      %s30 = sphi 0, %s28
      %s31 = sphi 0, %s29
      %s32 = sphi 0, %s30
      %s33 = sphi 0, %s31
      %s41 = sphi 0, %s41
      %s43 = sphi 0, %s41
      %s44 = sphi 0, %s43
      %s58 = sphi 0, %s44
      %s66 = sphi 0, %s68
      %s69 = sphi 0, %s66
      %s70 = sphi 0, %s69
      %s86 = sphi 0, %s70
    $region4: #{tpu_custom_call.1} parent=1 // loop_header_branch
      %24 = sbr.rel (%p22) target = $region8
    $region5: #{tpu_custom_call.1} parent=1 // loop_body
      %s26 = ssub.s32 %s21, 1
      %s27 = ssub.s32 %s21, 2
      %s34 = sadd.s32 1, %s29
      %p35 = scmp.ge.s32.totalorder %s34, 1
      %s36 = scalar_select %p35, 0, %s34
      %s37 = sadd.s32 1, %s28
      %s38 = scalar_select %p35, %s37, %s28
      %p39 = scmp.ge.s32.totalorder %s38, 2
      %s40 = scalar_select %p39, 0, %s38
      %s42 = sadd.s32 %s41, 1
      %p45 = scmp.eq.s32.totalorder %s21, 1
      %p46 = scmp.ne.s32.totalorder %s41, %s43
      %p47 = scmp.eq.s32.totalorder %s21, 0
      %p48 = por %p46, %p47
      %p49 = scmp.ne.s32.totalorder %s41, %s43
      %p50 = scmp.eq.s32.totalorder %s26, 1
      %p51 = por %p49, %p50
      %p52 = scmp.ne.s32.totalorder %s43, %s44
      %p53 = scmp.eq.s32.totalorder %s26, 0
      %p54 = por %p52, %p53
      %p55 = scmp.ne.s32.totalorder %s43, %s44
      %p56 = scmp.eq.s32.totalorder %s27, 1
      %p57 = por %p55, %p56
      %p59 = scmp.ne.s32.totalorder %s44, %s58
      %p60 = scmp.eq.s32.totalorder %s27, 0
      %p61 = por %p59, %p60
      %s62 = sadd.s32 %s28, %s29
      %s63 = sadd.s32 %s40, %s36
      %s64 = ssub.s32 %s62, %s63
      %p65 = scmp.eq.s32.totalorder %s64, 0
      %s67 = sadd.s32 %s66, 1
      %s68 = scalar_select %p65, %s66, %s67
      %p71 = pneg %p65
      %p72 = scmp.eq.s32.totalorder %s21, 1
      %p73 = por %p71, %p72
      %p74 = scmp.ne.s32.totalorder %s66, %s69
      %p75 = scmp.eq.s32.totalorder %s21, 0
      %p76 = por %p74, %p75
      %p77 = scmp.ne.s32.totalorder %s66, %s69
      %p78 = scmp.eq.s32.totalorder %s26, 1
      %p79 = por %p77, %p78
      %p80 = scmp.ne.s32.totalorder %s69, %s70
      %p81 = scmp.eq.s32.totalorder %s26, 0
      %p82 = por %p80, %p81
      %p83 = scmp.ne.s32.totalorder %s69, %s70
      %p84 = scmp.eq.s32.totalorder %s27, 1
      %p85 = por %p83, %p84
      %p87 = scmp.ne.s32.totalorder %s70, %s86
      %p88 = scmp.eq.s32.totalorder %s27, 0
      %p89 = por %p87, %p88
      %p90 = scmp.le.s32.totalorder 1, %s21
      %p91 = scmp.lt.s32.totalorder %s21, 3
      %p92 = pnand %p90, %p91
      %p93 = pneg %p92
      // Predicated region
      $region9: #{tpu_custom_call.1} parent=5 // pred_check
        _
      $region10: #{tpu_custom_call.1} parent=5 // pred_check_branch
        %95 = sbr.rel (%p92) target = $region12
      $region11: #{tpu_custom_call.1} parent=5 // pred_region
        %s96 = ssub.s32 %s21, 1
        // Predicated region
        $region13: #{tpu_custom_call.1} parent=11 // pred_check
          %p97 = pneg %p54
        $region14: #{tpu_custom_call.1} parent=11 // pred_check_branch
          %99 = sbr.rel (%p97) target = $region16
        $region15: #{tpu_custom_call.1} parent=11 // pred_region
          %101 = vsyncadd [#allocation7], 0
          %s102 = sshll.u32 %s2, 4
          %s103 = int_to_ptr.hbm [resolvable:$true] %s102
          %s104 = sshll.u32 [#allocation6], 4
          %s105 = int_to_ptr.vmem [resolvable:$true] %s104
          %110 = dma.hbm_to_vmem [thread:$0]  %s103, 2048, %s105, [#allocation7], 128, 128, 8
        $region16: #{tpu_custom_call.1} parent=11 // pred_fallthru
          _
      $region12: #{tpu_custom_call.1} parent=5 // pred_fallthru
        _
      %p111 = scmp.lt.s32.totalorder %s21, 2
      // Predicated region
      $region17: #{tpu_custom_call.1} parent=5 // pred_check
        %p112 = pneg %p111
      $region18: #{tpu_custom_call.1} parent=5 // pred_check_branch
        %114 = sbr.rel (%p112) target = $region20
      $region19: #{tpu_custom_call.1} parent=5 // pred_region
        _
      $region20: #{tpu_custom_call.1} parent=5 // pred_fallthru
        _
      %p115 = scmp.le.s32.totalorder 1, %s21
      %p116 = scmp.lt.s32.totalorder %s21, 3
      %p117 = pnand %p115, %p116
      %p118 = pneg %p117
      // Predicated region
      $region21: #{tpu_custom_call.1} parent=5 // pred_check
        _
      $region22: #{tpu_custom_call.1} parent=5 // pred_check_branch
        %120 = sbr.rel (%p117) target = $region24
      $region23: #{tpu_custom_call.1} parent=5 // pred_region
        %s121 = ssub.s32 %s21, 1
        // Predicated region
        $region25: #{tpu_custom_call.1} parent=23 // pred_check
          %p122 = pneg %p54
        $region26: #{tpu_custom_call.1} parent=23 // pred_check_branch
          %124 = sbr.rel (%p122) target = $region28
        $region27: #{tpu_custom_call.1} parent=23 // pred_region
          %126 = dma.done [#allocation7], 2048
        $region28: #{tpu_custom_call.1} parent=23 // pred_fallthru
          _
        %p127 = pneg %p54
        %p128 = pneg %p51
        %p129 = pneg %p82
        %p130 = pneg %p79
        %s131 = sand.u32 %s69, 1
        %s132 = scalar_lea.sflag [#allocation8], %s131
        %s133 = sand.u32 %s69, 1
        %s134 = smul.addr %s133, 128
        %s135 = scalar_lea.vmem [#allocation9], %s134
        %s136 = sadd.s32 %s30, %s31
        %s137 = smul.u32 16, %s136
        %p138 = scmp.eq.s32.totalorder %s31, 0
        // Predicated region
        $region29: #{tpu_custom_call.1} parent=23 // pred_check
          %p139 = pneg %p138
        $region30: #{tpu_custom_call.1} parent=23 // pred_check_branch
          %141 = sbr.rel (%p139) target = $region32
        $region31: #{tpu_custom_call.1} parent=23 // pred_region
          %s142 = smul.u32 %s30, 128
          loop: start=0, step=1, limit=16
          $region33: #{tpu_custom_call.1} parent=31 // loop_pre_header
            _
          $region34: #{tpu_custom_call.1} parent=31 // loop_header
            %s144 = sphi 0, %s148
            %p145 = scmp.ge.s32.totalorder %s144, 16
          $region35: #{tpu_custom_call.1} parent=31 // loop_header_branch
            %147 = sbr.rel (%p145) target = $region39
          $region36: #{tpu_custom_call.1} parent=31 // loop_body
            %s149 = smul.u32 %s144, 8
            %s150 = sadd.s32 %s142, %s149
            %s151 = sld [smem:[#allocation5 + %s150]]
            %s152 = scalar_lea.hbm %s1, %s151
            %s153 = scalar_lea.vmem [#allocation2], %s149
            // Predicated region
            $region40: #{tpu_custom_call.1} parent=36 // pred_check
              _
            $region41: #{tpu_custom_call.1} parent=36 // pred_check_branch
              %155 = sbr.rel target = $region43
            $region42: #{tpu_custom_call.1} parent=36 // pred_region
              %156 = sst [smem:[#allocation12]] [#allocation11]
              %157 = sst [smem:[#allocation13]] [#allocation10]
            $region43: #{tpu_custom_call.1} parent=36 // pred_fallthru
              _
            %159 = shalt.err (0)
            %s161 = sshll.u32 %s152, 4
            %s162 = int_to_ptr.hbm [resolvable:$true] %s161
            %s163 = sshll.u32 %s153, 4
            %s164 = int_to_ptr.vmem [resolvable:$true] %s163
            %166 = dma.hbm_to_vmem [thread:$0]  %s162, 16, %s164, [#allocation3]
            %s167 = sadd.s32 %s149, 1
            %s168 = sadd.s32 %s142, %s167
            %s169 = sld [smem:[#allocation5 + %s168]]
            %s170 = scalar_lea.hbm %s1, %s169
            %s171 = scalar_lea.vmem [#allocation2], %s167
            // Predicated region
            $region44: #{tpu_custom_call.1} parent=36 // pred_check
              _
            $region45: #{tpu_custom_call.1} parent=36 // pred_check_branch
              %173 = sbr.rel target = $region47
            $region46: #{tpu_custom_call.1} parent=36 // pred_region
              %174 = sst [smem:[#allocation12]] [#allocation15]
              %175 = sst [smem:[#allocation13]] [#allocation14]
            $region47: #{tpu_custom_call.1} parent=36 // pred_fallthru
              _
            %177 = shalt.err (0)
            %s179 = sshll.u32 %s170, 4
            %s180 = int_to_ptr.hbm [resolvable:$true] %s179
            %s181 = sshll.u32 %s171, 4
            %s182 = int_to_ptr.vmem [resolvable:$true] %s181
            %184 = dma.hbm_to_vmem [thread:$0]  %s180, 16, %s182, [#allocation3]
            %s185 = sadd.s32 %s149, 2
            %s186 = sadd.s32 %s142, %s185
            %s187 = sld [smem:[#allocation5 + %s186]]
            %s188 = scalar_lea.hbm %s1, %s187
            %s189 = scalar_lea.vmem [#allocation2], %s185
            // Predicated region
            $region48: #{tpu_custom_call.1} parent=36 // pred_check
              _
            $region49: #{tpu_custom_call.1} parent=36 // pred_check_branch
              %191 = sbr.rel target = $region51
            $region50: #{tpu_custom_call.1} parent=36 // pred_region
              %192 = sst [smem:[#allocation12]] [#allocation17]
              %193 = sst [smem:[#allocation13]] [#allocation16]
            $region51: #{tpu_custom_call.1} parent=36 // pred_fallthru
              _
            %195 = shalt.err (0)
            %s197 = sshll.u32 %s188, 4
            %s198 = int_to_ptr.hbm [resolvable:$true] %s197
            %s199 = sshll.u32 %s189, 4
            %s200 = int_to_ptr.vmem [resolvable:$true] %s199
            %202 = dma.hbm_to_vmem [thread:$0]  %s198, 16, %s200, [#allocation3]
            %s203 = sadd.s32 %s149, 3
            %s204 = sadd.s32 %s142, %s203
            %s205 = sld [smem:[#allocation5 + %s204]]
            %s206 = scalar_lea.hbm %s1, %s205
            %s207 = scalar_lea.vmem [#allocation2], %s203
            // Predicated region
            $region52: #{tpu_custom_call.1} parent=36 // pred_check
              _
            $region53: #{tpu_custom_call.1} parent=36 // pred_check_branch
              %209 = sbr.rel target = $region55
            $region54: #{tpu_custom_call.1} parent=36 // pred_region
              %210 = sst [smem:[#allocation12]] [#allocation19]
              %211 = sst [smem:[#allocation13]] [#allocation18]
            $region55: #{tpu_custom_call.1} parent=36 // pred_fallthru
              _
            %213 = shalt.err (0)
            %s215 = sshll.u32 %s206, 4
            %s216 = int_to_ptr.hbm [resolvable:$true] %s215
            %s217 = sshll.u32 %s207, 4
            %s218 = int_to_ptr.vmem [resolvable:$true] %s217
            %220 = dma.hbm_to_vmem [thread:$0]  %s216, 16, %s218, [#allocation3]
            %s221 = sadd.s32 %s149, 4
            %s222 = sadd.s32 %s142, %s221
            %s223 = sld [smem:[#allocation5 + %s222]]
            %s224 = scalar_lea.hbm %s1, %s223
            %s225 = scalar_lea.vmem [#allocation2], %s221
            // Predicated region
            $region56: #{tpu_custom_call.1} parent=36 // pred_check
              _
            $region57: #{tpu_custom_call.1} parent=36 // pred_check_branch
              %227 = sbr.rel target = $region59
            $region58: #{tpu_custom_call.1} parent=36 // pred_region
              %228 = sst [smem:[#allocation12]] [#allocation21]
              %229 = sst [smem:[#allocation13]] [#allocation20]
            $region59: #{tpu_custom_call.1} parent=36 // pred_fallthru
              _
            %231 = shalt.err (0)
            %s233 = sshll.u32 %s224, 4
            %s234 = int_to_ptr.hbm [resolvable:$true] %s233
            %s235 = sshll.u32 %s225, 4
            %s236 = int_to_ptr.vmem [resolvable:$true] %s235
            %238 = dma.hbm_to_vmem [thread:$0]  %s234, 16, %s236, [#allocation3]
            %s239 = sadd.s32 %s149, 5
            %s240 = sadd.s32 %s142, %s239
            %s241 = sld [smem:[#allocation5 + %s240]]
            %s242 = scalar_lea.hbm %s1, %s241
            %s243 = scalar_lea.vmem [#allocation2], %s239
            // Predicated region
            $region60: #{tpu_custom_call.1} parent=36 // pred_check
              _
            $region61: #{tpu_custom_call.1} parent=36 // pred_check_branch
              %245 = sbr.rel target = $region63
            $region62: #{tpu_custom_call.1} parent=36 // pred_region
              %246 = sst [smem:[#allocation12]] [#allocation23]
              %247 = sst [smem:[#allocation13]] [#allocation22]
            $region63: #{tpu_custom_call.1} parent=36 // pred_fallthru
              _
            %249 = shalt.err (0)
            %s251 = sshll.u32 %s242, 4
            %s252 = int_to_ptr.hbm [resolvable:$true] %s251
            %s253 = sshll.u32 %s243, 4
            %s254 = int_to_ptr.vmem [resolvable:$true] %s253
            %256 = dma.hbm_to_vmem [thread:$0]  %s252, 16, %s254, [#allocation3]
            %s257 = sadd.s32 %s149, 6
            %s258 = sadd.s32 %s142, %s257
            %s259 = sld [smem:[#allocation5 + %s258]]
            %s260 = scalar_lea.hbm %s1, %s259
            %s261 = scalar_lea.vmem [#allocation2], %s257
            // Predicated region
            $region64: #{tpu_custom_call.1} parent=36 // pred_check
              _
            $region65: #{tpu_custom_call.1} parent=36 // pred_check_branch
              %263 = sbr.rel target = $region67
            $region66: #{tpu_custom_call.1} parent=36 // pred_region
              %264 = sst [smem:[#allocation12]] [#allocation25]
              %265 = sst [smem:[#allocation13]] [#allocation24]
            $region67: #{tpu_custom_call.1} parent=36 // pred_fallthru
              _
            %267 = shalt.err (0)
            %s269 = sshll.u32 %s260, 4
            %s270 = int_to_ptr.hbm [resolvable:$true] %s269
            %s271 = sshll.u32 %s261, 4
            %s272 = int_to_ptr.vmem [resolvable:$true] %s271
            %274 = dma.hbm_to_vmem [thread:$0]  %s270, 16, %s272, [#allocation3]
            %s275 = sadd.s32 %s149, 7
            %s276 = sadd.s32 %s142, %s275
            %s277 = sld [smem:[#allocation5 + %s276]]
            %s278 = scalar_lea.hbm %s1, %s277
            %s279 = scalar_lea.vmem [#allocation2], %s275
            // Predicated region
            $region68: #{tpu_custom_call.1} parent=36 // pred_check
              _
            $region69: #{tpu_custom_call.1} parent=36 // pred_check_branch
              %281 = sbr.rel target = $region71
            $region70: #{tpu_custom_call.1} parent=36 // pred_region
              %282 = sst [smem:[#allocation12]] [#allocation27]
              %283 = sst [smem:[#allocation13]] [#allocation26]
            $region71: #{tpu_custom_call.1} parent=36 // pred_fallthru
              _
            %285 = shalt.err (0)
            %s287 = sshll.u32 %s278, 4
            %s288 = int_to_ptr.hbm [resolvable:$true] %s287
            %s289 = sshll.u32 %s279, 4
            %s290 = int_to_ptr.vmem [resolvable:$true] %s289
            %292 = dma.hbm_to_vmem [thread:$0]  %s288, 16, %s290, [#allocation3]
          $region37: #{tpu_custom_call.1} parent=31 // loop_footer
            %s148 = sadd.s32 1, %s144
          $region38: #{tpu_custom_call.1} parent=31 // loop_footer_branch
            %143 = sbr.rel target = $region34
          $region39: #{tpu_custom_call.1} parent=31 // loop_exit
            _
        $region32: #{tpu_custom_call.1} parent=23 // pred_fallthru
          _
        %p293 = scmp.lt.s32.totalorder %s31, 0
        %s294 = ssub.s32 0, %s31
        %s295 = scalar_select %p293, %s294, %s31
        %s296 = sand.u32 %s295, 3
        %s297 = ssub.s32 0, %s296
        %s298 = scalar_select %p293, %s297, %s296
        %p299 = scmp.ne.s32.totalorder %s298, 0
        %p300 = scmp.lt.s32.totalorder %s298, 0
        %p301 = pnand %p300, %p299
        %p302 = pneg %p301
        %s303 = sadd.s32 %s298, 4
        %s304 = scalar_select %p302, %s303, %s298
        %s305 = smul.u32 %s304, 128
        %s306 = scalar_lea.vmem [#allocation2], %s305
        %s307 = scalar_lea.sflag [#allocation3], %s304
        %s308 = smul.u32 128, 1
        %s309 = sshll.u32 %s308, 4
        %310 = dma.done %s307, %s309
        %v311 = vld [vmem:[%s306] sm:$0xff]
        %v312 = vld [vmem:[%s306 + $0x8] sm:$0xff]
        %v313 = vld [vmem:[%s306 + $0x10] sm:$0xff]
        %v314 = vld [vmem:[%s306 + $0x18] sm:$0xff]
        %v315 = vld [vmem:[%s306 + $0x20] sm:$0xff]
        %v316 = vld [vmem:[%s306 + $0x28] sm:$0xff]
        %v317 = vld [vmem:[%s306 + $0x30] sm:$0xff]
        %v318 = vld [vmem:[%s306 + $0x38] sm:$0xff]
        %v319 = vld [vmem:[%s306 + $0x40] sm:$0xff]
        %v320 = vld [vmem:[%s306 + $0x48] sm:$0xff]
        %v321 = vld [vmem:[%s306 + $0x50] sm:$0xff]
        %v322 = vld [vmem:[%s306 + $0x58] sm:$0xff]
        %v323 = vld [vmem:[%s306 + $0x60] sm:$0xff]
        %v324 = vld [vmem:[%s306 + $0x68] sm:$0xff]
        %v325 = vld [vmem:[%s306 + $0x70] sm:$0xff]
        %v326 = vld [vmem:[%s306 + $0x78] sm:$0xff]
        %v327 = vld [vmem:[#allocation6] sm:$0xff]
        %v328 = vld [vmem:[#allocation6 + $0x8] sm:$0xff]
        %v329 = vld [vmem:[#allocation6 + $0x10] sm:$0xff]
        %v330 = vld [vmem:[#allocation6 + $0x18] sm:$0xff]
        %v331 = vld [vmem:[#allocation6 + $0x20] sm:$0xff]
        %v332 = vld [vmem:[#allocation6 + $0x28] sm:$0xff]
        %v333 = vld [vmem:[#allocation6 + $0x30] sm:$0xff]
        %v334 = vld [vmem:[#allocation6 + $0x38] sm:$0xff]
        %v335 = vld [vmem:[#allocation6 + $0x40] sm:$0xff]
        %v336 = vld [vmem:[#allocation6 + $0x48] sm:$0xff]
        %v337 = vld [vmem:[#allocation6 + $0x50] sm:$0xff]
        %v338 = vld [vmem:[#allocation6 + $0x58] sm:$0xff]
        %v339 = vld [vmem:[#allocation6 + $0x60] sm:$0xff]
        %v340 = vld [vmem:[#allocation6 + $0x68] sm:$0xff]
        %v341 = vld [vmem:[#allocation6 + $0x70] sm:$0xff]
        %v342 = vld [vmem:[#allocation6 + $0x78] sm:$0xff]
        %v343 = vadd.f32 %v311, %v327
        %v344 = vadd.f32 %v312, %v328
        %v345 = vadd.f32 %v313, %v329
        %v346 = vadd.f32 %v314, %v330
        %v347 = vadd.f32 %v315, %v331
        %v348 = vadd.f32 %v316, %v332
        %v349 = vadd.f32 %v317, %v333
        %v350 = vadd.f32 %v318, %v334
        %v351 = vadd.f32 %v319, %v335
        %v352 = vadd.f32 %v320, %v336
        %v353 = vadd.f32 %v321, %v337
        %v354 = vadd.f32 %v322, %v338
        %v355 = vadd.f32 %v323, %v339
        %v356 = vadd.f32 %v324, %v340
        %v357 = vadd.f32 %v325, %v341
        %v358 = vadd.f32 %v326, %v342
        %359 = vst [vmem:[%s135] sm:$0xff] %v343
        %360 = vst [vmem:[%s135 + $0x8] sm:$0xff] %v344
        %361 = vst [vmem:[%s135 + $0x10] sm:$0xff] %v345
        %362 = vst [vmem:[%s135 + $0x18] sm:$0xff] %v346
        %363 = vst [vmem:[%s135 + $0x20] sm:$0xff] %v347
        %364 = vst [vmem:[%s135 + $0x28] sm:$0xff] %v348
        %365 = vst [vmem:[%s135 + $0x30] sm:$0xff] %v349
        %366 = vst [vmem:[%s135 + $0x38] sm:$0xff] %v350
        %367 = vst [vmem:[%s135 + $0x40] sm:$0xff] %v351
        %368 = vst [vmem:[%s135 + $0x48] sm:$0xff] %v352
        %369 = vst [vmem:[%s135 + $0x50] sm:$0xff] %v353
        %370 = vst [vmem:[%s135 + $0x58] sm:$0xff] %v354
        %371 = vst [vmem:[%s135 + $0x60] sm:$0xff] %v355
        %372 = vst [vmem:[%s135 + $0x68] sm:$0xff] %v356
        %373 = vst [vmem:[%s135 + $0x70] sm:$0xff] %v357
        %374 = vst [vmem:[%s135 + $0x78] sm:$0xff] %v358
        %s375 = sand.u32 %s69, 1
        %s376 = scalar_lea.sflag [#allocation8], %s375
        %s377 = sand.u32 %s69, 1
        %s378 = smul.addr %s377, 128
        %s379 = scalar_lea.vmem [#allocation9], %s378
        // Predicated region
        $region72: #{tpu_custom_call.1} parent=23 // pred_check
          %p380 = pneg %p79
        $region73: #{tpu_custom_call.1} parent=23 // pred_check_branch
          %382 = sbr.rel (%p380) target = $region75
        $region74: #{tpu_custom_call.1} parent=23 // pred_region
          %s383 = sadd.s32 %s30, %s31
          %s384 = smul.u32 16, %s383
          %386 = vsyncadd %s376, 0
          %s387 = smul.addr %s384, 8
          %s388 = scalar_lea.hbm %s3, %s387
          %s389 = sshll.u32 %s379, 4
          %s390 = int_to_ptr.vmem [resolvable:$true] %s389
          %s391 = sshll.u32 %s388, 4
          %s392 = int_to_ptr.hbm [resolvable:$true] %s391
          %397 = dma.vmem_to_hbm [thread:$0]  %s390, 2048, %s392, %s376, 128, 128, 8
        $region75: #{tpu_custom_call.1} parent=23 // pred_fallthru
          _
      $region24: #{tpu_custom_call.1} parent=5 // pred_fallthru
        _
      %p398 = scmp.le.s32.totalorder 2, %s21
      // Predicated region
      $region76: #{tpu_custom_call.1} parent=5 // pred_check
        %p399 = pneg %p398
      $region77: #{tpu_custom_call.1} parent=5 // pred_check_branch
        %401 = sbr.rel (%p399) target = $region79
      $region78: #{tpu_custom_call.1} parent=5 // pred_region
        %s402 = ssub.s32 %s21, 2
        // Predicated region
        $region80: #{tpu_custom_call.1} parent=78 // pred_check
          %p403 = pneg %p85
        $region81: #{tpu_custom_call.1} parent=78 // pred_check_branch
          %405 = sbr.rel (%p403) target = $region83
        $region82: #{tpu_custom_call.1} parent=78 // pred_region
          %s406 = sand.u32 %s70, 1
          %s407 = scalar_lea.sflag [#allocation8], %s406
          %s408 = sand.u32 %s70, 1
          %s409 = smul.addr %s408, 128
          %s410 = scalar_lea.vmem [#allocation9], %s409
          %412 = dma.done %s407, 2048
        $region83: #{tpu_custom_call.1} parent=78 // pred_fallthru
          _
      $region79: #{tpu_custom_call.1} parent=5 // pred_fallthru
        _
    $region6: #{tpu_custom_call.1} parent=1 // loop_footer
      %s25 = sadd.s32 1, %s21
    $region7: #{tpu_custom_call.1} parent=1 // loop_footer_branch
      %20 = sbr.rel target = $region3
    $region8: #{tpu_custom_call.1} parent=1 // loop_exit
      _
    %413 = vsyncpa [#allocation7], 1
    %s414 = scalar_lea.sflag [#allocation7], 1
    %415 = vsyncpa %s414, 1
    %416 = vsyncpa [#allocation8], 1
    %s417 = scalar_lea.sflag [#allocation8], 1
    %418 = vsyncpa %s417, 1
  %419 = vsyncmov [#allocation3]
  %s420 = vpop.sfrf %419
  %p421 = scmp.eq.s32.totalorder %s420, 0
  %p422 = pneg %p421
  %424 = shalt.err (%p422)
  %s425 = scalar_lea.sflag [#allocation3], 1
  %426 = vsyncmov %s425
  %s427 = vpop.sfrf %426
  %p428 = scmp.eq.s32.totalorder %s427, 0
  %p429 = pneg %p428
  %431 = shalt.err (%p429)
  %s432 = scalar_lea.sflag [#allocation3], 2
  %433 = vsyncmov %s432
  %s434 = vpop.sfrf %433
  %p435 = scmp.eq.s32.totalorder %s434, 0
  %p436 = pneg %p435
  %438 = shalt.err (%p436)
  %s439 = scalar_lea.sflag [#allocation3], 3
  %440 = vsyncmov %s439
  %s441 = vpop.sfrf %440
  %p442 = scmp.eq.s32.totalorder %s441, 0
  %p443 = pneg %p442
  %445 = shalt.err (%p443)

</llo_original>
